<compile_context>
chip_gen: v6e
topology: v6e:2x2x1
jax: 0.10.0
libtpu: 0.0.40
codegen_flags: <defaults>
</compile_context>

<pallas_src>
import functools

import jax
import jax.numpy as jnp
from jax.experimental import pallas as pl
from jax.experimental.pallas import tpu as pltpu

_LANES = 128


def _relu_kernel(x_ref, o_ref):
    # Pure VPU elementwise max against an immediate zero (no zeros tile).
    o_ref[...] = jnp.maximum(x_ref[...], 0)


def _sublane_multiple(dtype) -> int:
    # Sub-32-bit dtypes pack along sublanes: bf16 -> 16 rows, int8/fp8 -> 32.
    bits = jnp.dtype(dtype).itemsize * 8
    return max(8, (32 // max(bits, 1)) * 8)


@functools.lru_cache(maxsize=None)
def _base_tile_rows() -> int:
    """Chip-generation-gated block height, in f32-equivalent rows of 128 lanes."""
    try:
        kind = jax.devices()[0].device_kind.lower()
    except Exception:  # pragma: no cover - defensive; unknown backend
        kind = ""
    # v6e / v7x: 4 MiB f32 blocks (16 MiB double-buffered in+out footprint).
    if ("v6" in kind) or ("v7" in kind):
        return 8192
    # v5e (16 MiB scoped-VMEM default), older or unknown chips: 2 MiB blocks.
    return 4096


def relu(x: jax.Array, *, tile_rows=None, min_pallas_bytes: int = 1 << 20,
         donate: bool = False) -> jax.Array:
    """Elementwise ReLU matching torch's ``input.clamp(min=0)``.

    Arbitrary shape/dtype. Lane-aligned flat sizes (n % 128 == 0) stream through
    a Pallas kernel over a lane-dense (rows, 128) view; tiny or ragged inputs
    use a fused XLA maximum (cheaper than padding or a kernel launch).
    """
    orig_shape = x.shape
    dtype = x.dtype
    n = x.size
    if n == 0:
        return x
    itemsize = jnp.dtype(dtype).itemsize
    nbytes = n * itemsize

    # Ragged-to-lane or tiny inputs: a fused XLA maximum is 1 read + 1 write,
    # whereas the kernel path would need a pad + slice (3x HBM traffic) or pay
    # the pallas_call launch overhead for a few KiB.
    if (n % _LANES != 0) or (nbytes < min_pallas_bytes):
        return jnp.maximum(x, 0)

    rows = n // _LANES
    x2d = x.reshape(rows, _LANES)  # free bitcast for contiguous inputs

    sub = _sublane_multiple(dtype)
    if tile_rows is None:
        # Keep a roughly constant block byte-size across dtypes.
        tile_rows = _base_tile_rows() * max(1, 4 // itemsize)

    tr = min(tile_rows, rows)
    # Guarantee >= 2 grid steps for mid-size inputs so both of v7x's two
    # TensorCores get work (one extra ~0.35 us step is harmless on 1-TC chips).
    if pl.cdiv(rows, tr) == 1 and rows > 2 * sub:
        tr = pl.cdiv(rows, 2)
    # Keep block rows a multiple of the dtype's sublane packing.
    tr = max(sub, ((tr + sub - 1) // sub) * sub)
    grid = (pl.cdiv(rows, tr),)  # ragged final block is masked by Pallas

    block_bytes = tr * _LANES * itemsize
    footprint = 4 * block_bytes  # double-buffered input + output
    compiler_kwargs = dict(dimension_semantics=("parallel",))
    if footprint > (12 << 20):
        # Larger tiles collide with v5e's 16 MiB scoped-VMEM default; raise the
        # limit (still well under every generation's physical VMEM).
        compiler_kwargs["vmem_limit_bytes"] = min(2 * footprint, 48 << 20)

    out2d = pl.pallas_call(
        _relu_kernel,
        out_shape=jax.ShapeDtypeStruct((rows, _LANES), dtype),
        grid_spec=pltpu.PrefetchScalarGridSpec(
            num_scalar_prefetch=0,
            grid=grid,
            in_specs=[pl.BlockSpec((tr, _LANES), lambda i: (i, 0))],
            out_specs=pl.BlockSpec((tr, _LANES), lambda i: (i, 0)),
        ),
        compiler_params=pltpu.CompilerParams(**compiler_kwargs),
        cost_estimate=pl.CostEstimate(
            flops=n, transcendentals=0, bytes_accessed=2 * nbytes),
        input_output_aliases=({0: 0} if donate else {}),
    )(x2d)

    return out2d.reshape(orig_shape)


if __name__ == "__main__":
    key = jax.random.PRNGKey(0)
    k1, k2, k3, k4 = jax.random.split(key, 4)

    # Small NCHW activation (module-consistent shape): below the Pallas
    # threshold -> fused XLA path.
    x = jax.random.normal(k1, (2, 4, 16, 16), dtype=jnp.float32)
    y = relu(x)
    jax.block_until_ready(y)
    assert y.shape == x.shape and y.dtype == x.dtype
    assert jnp.array_equal(y, jnp.maximum(x, 0.0))

    # Same small input forced through the Pallas kernel path.
    y_k = relu(x, min_pallas_bytes=0)
    jax.block_until_ready(y_k)
    assert jnp.array_equal(y_k, jnp.maximum(x, 0.0))

    # Moderate activation (1 MiB f32): exercises the multi-step pipelined grid.
    xb = jax.random.normal(k2, (8, 8, 64, 64), dtype=jnp.float32)
    yb = relu(xb)
    jax.block_until_ready(yb)
    assert jnp.array_equal(yb, jnp.maximum(xb, 0.0))

    # Ragged flat size (not a multiple of 128): fallback path, no pad/slice.
    xr = jax.random.normal(k3, (3, 5, 7, 11), dtype=jnp.float32)
    yr = relu(xr)
    jax.block_until_ready(yr)
    assert jnp.array_equal(yr, jnp.maximum(xr, 0.0))

    # bf16 (sub-32-bit sublane packing) through the Pallas path.
    xh = jax.random.normal(k4, (2, 4, 16, 16)).astype(jnp.bfloat16)
    yh = relu(xh, min_pallas_bytes=0)
    jax.block_until_ready(yh)
    assert yh.dtype == jnp.bfloat16
    assert jnp.array_equal(yh, jnp.maximum(xh, jnp.bfloat16(0)))

    print("KERNEL_OK")
</pallas_src>

<mosaic_0001>
module attributes {stable_mosaic.version = 11 : i64} {
  func.func @_relu_kernel(%arg0: i32, %arg1: memref<16x128xf32, #tpu.memory_space<vmem>>, %arg2: memref<16x128xf32, #tpu.memory_space<vmem>>) attributes {dimension_semantics = [#tpu.dimension_semantics<parallel>], iteration_bounds = array<i64: 1>, scalar_prefetch = 0 : i64, scratch_operands = 0 : i64, tpu.core_type = #tpu.core_type<tc>, window_params = [{transform_indices = @transform_0, window_bounds = array<i64: 16, 128>}, {transform_indices = @transform_1, window_bounds = array<i64: 16, 128>}]} {
    %c0 = arith.constant 0 : index
    %c0_0 = arith.constant 0 : index
    %0 = vector.load %arg1[%c0, %c0_0] : memref<16x128xf32, #tpu.memory_space<vmem>>, vector<16x128xf32>
    %cst = arith.constant 0.000000e+00 : f32
    %1 = vector.broadcast %cst : f32 to vector<16x128xf32>
    %2 = arith.maximumf %0, %1 : vector<16x128xf32>
    %c0_1 = arith.constant 0 : index
    %c0_2 = arith.constant 0 : index
    %3 = vector.load %arg2[%c0_1, %c0_2] : memref<16x128xf32, #tpu.memory_space<vmem>>, vector<16x128xf32>
    tpu.vector_store %arg2[%c0_1, %c0_2], %2 {strides = array<i32>} : memref<16x128xf32, #tpu.memory_space<vmem>>, vector<16x128xf32>,
    return
  }
  func.func @transform_0(%arg0: i32) -> (i32, i32) {
    %c0_i32 = arith.constant 0 : i32
    %c0_i32_0 = arith.constant 0 : i32
    return %arg0, %c0_i32 : i32, i32
  }
  func.func @transform_1(%arg0: i32) -> (i32, i32) {
    %c0_i32 = arith.constant 0 : i32
    %c0_i32_0 = arith.constant 0 : i32
    return %arg0, %c0_i32 : i32, i32
  }
}

</mosaic_0001>

<llo_original>
// kernel: tpu_custom_call.1
$region0: #{tpu_custom_call.1}
  #allocation0 [shape = 'u32[]', space=smem, size = 0x4, offset = 0x4, fixed_abs, tag = 'smem constant byte address 0x4 - core index']
  #allocation1 [shape = 'u32[144,128]{1,0:T(1,128)}', space=vmem, size = 0x12000, scoped, tag = 'internal scratch']
  %s0 = inlined_call_operand.hbm [shape: f32[16,128], index: 0, kind: input, shape index: {}]
  %s1 = inlined_call_operand.hbm [shape: f32[16,128], index: 1, kind: output, shape index: {}]
  %s2 = sld [smem:[#allocation0]]
  $region18: #{tpu_custom_call.1} parent=0
    _
  %s4 = ssub.s32 1, %s2
  %s5 = scalar_select 0, %s4, %s2
  $region1: #{tpu_custom_call.1} parent=0
    #allocation2 [shape = 'u8[8192]{0}', space=vmem, size = 0x2000, scoped, tag = 'input window, operand 0, single buffered']
    #allocation3 [shape = 's32[1]{0}', space=sflag, size = 0x4, scoped, tag = 'scoped memory for tpu_custom_call.1']
    #allocation4 [shape = 's32[1]{0}', space=sflag, size = 0x4, scoped, tag = 'scoped memory for tpu_custom_call.1']
    #allocation5 [shape = 'u8[8192]{0}', space=vmem, size = 0x2000, scoped, tag = 'output window, operand 0, single buffered']
    %6 = vsyncpa [#allocation3], 0
    %7 = vsyncpa [#allocation4], 0
    // Predicated region
    $region2: #{tpu_custom_call.1} parent=1 // pred_check
      _
    $region3: #{tpu_custom_call.1} parent=1 // pred_check_branch
      %9 = sbr.rel (0) target = $region5
    $region4: #{tpu_custom_call.1} parent=1 // pred_region
      %s11 = ssub.s32 256, 256
      %12 = vsyncadd [#allocation3], %s11
      %s13 = sshll.u32 [#allocation2], 4
      %s14 = int_to_ptr.vmem [resolvable:$true] %s13
      %19 = dma.hbm_to_vmem [thread:$0]  %s0, 256, %s14, [#allocation3], 128, 128, 8
    $region5: #{tpu_custom_call.1} parent=1 // pred_fallthru
      _
    // Predicated region
    $region6: #{tpu_custom_call.1} parent=1 // pred_check
      _
    $region7: #{tpu_custom_call.1} parent=1 // pred_check_branch
      %21 = sbr.rel (0) target = $region9
    $region8: #{tpu_custom_call.1} parent=1 // pred_region
      %22 = dma.done [#allocation3], 256
    $region9: #{tpu_custom_call.1} parent=1 // pred_fallthru
      _
    %v23 = vld [vmem:[#allocation2] sm:$0xff]
    %v24 = vld [vmem:[#allocation2 + $0x8] sm:$0xff]
    %v25 = vmax.f32 %v23, 0.0
    %v26 = vmax.f32 %v24, 0.0
    %27 = vst [vmem:[#allocation5] sm:$0xff] %v25
    %28 = vst [vmem:[#allocation5 + $0x8] sm:$0xff] %v26
    // Predicated region
    $region10: #{tpu_custom_call.1} parent=1 // pred_check
      _
    $region11: #{tpu_custom_call.1} parent=1 // pred_check_branch
      %30 = sbr.rel (0) target = $region13
    $region12: #{tpu_custom_call.1} parent=1 // pred_region
      %s32 = ssub.s32 256, 256
      %33 = vsyncadd [#allocation4], %s32
      %s34 = sshll.u32 [#allocation5], 4
      %s35 = int_to_ptr.vmem [resolvable:$true] %s34
      %40 = dma.vmem_to_hbm [thread:$0]  %s35, 256, %s1, [#allocation4], 128, 128, 8
    $region13: #{tpu_custom_call.1} parent=1 // pred_fallthru
      _
    // Predicated region
    $region14: #{tpu_custom_call.1} parent=1 // pred_check
      _
    $region15: #{tpu_custom_call.1} parent=1 // pred_check_branch
      %42 = sbr.rel (0) target = $region17
    $region16: #{tpu_custom_call.1} parent=1 // pred_region
      %43 = dma.done [#allocation4], 256
    $region17: #{tpu_custom_call.1} parent=1 // pred_fallthru
      _
    %44 = vsyncpa [#allocation3], 1
    %45 = vsyncpa [#allocation4], 1

</llo_original>
